<compile_context>
chip_gen: v6e
topology: v6e:2x2x1
jax: 0.10.0
libtpu: 0.0.40
codegen_flags: <defaults>
</compile_context>

<pallas_src>
import functools

import jax
import jax.numpy as jnp
from jax import lax
from jax.experimental import pallas as pl
from jax.experimental.pallas import tpu as pltpu

HIDDEN_SIZE = 16
WORLD_SIZE = 1  # tensor-parallel world size for the (emulated) reduce-scatter

_LANES = 128
_SUBLANES = 8


def _round_up(x, m):
    return -(-x // m) * m


def _mm_kernel(x_ref, w_ref, o_ref):
    # x_ref: (tm, H) activation tile
    # w_ref: (tn, H) weight (or weight stripe), resident in VMEM
    # o_ref: (tm, tn) output tile
    # Contract on the last dim of BOTH operands -> no transpose in the kernel;
    # the MXU consumes the (N, K) operand directly via dot_general.
    o_ref[...] = lax.dot_general(
        x_ref[...],
        w_ref[...],
        dimension_numbers=(((1,), (1,)), ((), ())),
        preferred_element_type=jnp.float32,
    ).astype(o_ref.dtype)


def pad_weight_lane_dense(gate_proj):
    """Pad the (N, H) weight's N to a multiple of 128 lanes.

    For real model sizes call this ONCE at init and feed the padded weight to
    mm_pallas; doing it per forward is a full weight read+write through HBM.
    """
    N = gate_proj.shape[0]
    Np = _round_up(N, _LANES)
    if Np != N:
        gate_proj = jnp.pad(gate_proj, ((0, Np - N), (0, 0)))
    return gate_proj


def _mm_small(x2d, gate_proj):
    """Single (or dual, for megacore) block GEMM: no pads, no slices."""
    M, H = x2d.shape
    N = gate_proj.shape[0]

    # v7x has 2 TensorCores: give the "parallel" M axis 2 steps when the rows
    # split cleanly into sublane-aligned tiles; otherwise one full-array block.
    if M >= 16 and M % 16 == 0:
        tm, grid_m = M // 2, 2
    else:
        tm, grid_m = M, 1

    cost = pl.CostEstimate(
        flops=2 * M * N * H,
        transcendentals=0,
        bytes_accessed=4 * (M * H + N * H + M * N),
    )
    return pl.pallas_call(
        _mm_kernel,
        out_shape=jax.ShapeDtypeStruct((M, N), jnp.float32),
        grid_spec=pltpu.PrefetchScalarGridSpec(
            num_scalar_prefetch=0,
            grid=(grid_m,),
            in_specs=[
                pl.BlockSpec((tm, H), lambda i: (i, 0)),
                # Constant index_map: weight stays resident in VMEM across
                # every M tile (no per-step weight DMA).
                pl.BlockSpec((N, H), lambda i: (0, 0)),
            ],
            out_specs=pl.BlockSpec((tm, N), lambda i: (i, 0)),
        ),
        compiler_params=pltpu.CompilerParams(
            # M tiles are independent -> megacore-shardable. NOTE: once a
            # fused ring reduce-scatter carries RDMA ordering across grid
            # steps, this axis must become "arbitrary".
            dimension_semantics=("parallel",),
        ),
        cost_estimate=cost,
    )(x2d, gate_proj)


def _mm_large(x2d, gate_proj):
    """Real-model-size path (not exercised by the 16x16x32 test below)."""
    M, H = x2d.shape
    N = gate_proj.shape[0]

    # Lane-dense N so output stores are unmasked vst (the measured big lever
    # on large outputs).  Hoist this pad to init for real use.
    gate_proj = pad_weight_lane_dense(gate_proj)
    Np = gate_proj.shape[0]

    # Measured sweet spot ~512-row tiles; partial last M block is masked by
    # Pallas (grid = cdiv), so no perf cliff for awkward M.
    tm = 512
    grid_m = pl.cdiv(M, tm)
    # Column stripes keep the resident weight within v7x's 64 MiB VMEM while
    # preserving reuse across all M tiles of a stripe (N is the OUTER, slower
    # grid axis; the weight block index is constant across the inner M axis).
    tn = min(Np, 512)
    while Np % tn != 0:
        tn -= _LANES
    grid_n = Np // tn

    cost = pl.CostEstimate(
        flops=2 * M * Np * H,
        transcendentals=0,
        bytes_accessed=4 * (M * H * grid_n + Np * H + M * Np),
    )
    out_p = pl.pallas_call(
        _mm_kernel,
        out_shape=jax.ShapeDtypeStruct((M, Np), jnp.float32),
        grid_spec=pltpu.PrefetchScalarGridSpec(
            num_scalar_prefetch=0,
            grid=(grid_n, grid_m),
            in_specs=[
                pl.BlockSpec((tm, H), lambda j, i: (i, 0)),
                # Constant within a stripe -> single-buffered weight halves
                # its VMEM footprint (matters on v7x's 64 MiB VMEM).
                pl.BlockSpec((tn, H), lambda j, i: (j, 0),
                             pipeline_mode=pl.Buffered(1)),
            ],
            out_specs=pl.BlockSpec((tm, tn), lambda j, i: (i, j)),
        ),
        compiler_params=pltpu.CompilerParams(
            dimension_semantics=("parallel", "parallel"),
            # Explicit budget: weight stripe + 2x(x tile) + 2x(out tile) must
            # fit; 48 MiB leaves headroom under v7x's 64 MiB physical VMEM.
            vmem_limit_bytes=48 * 1024 * 1024,
        ),
        cost_estimate=cost,
    )(x2d, gate_proj)
    # TODO(synk): for H >= ~1024 add a K ("arbitrary") grid axis with an f32
    # VMEM accumulator (pl.when init/finalize) and cast inputs to bf16.

    if Np != N:
        out_p = out_p[:, :N]
    return out_p


def mm_pallas(x2d, gate_proj):
    """y = x2d @ gate_proj.T via a Pallas MXU kernel.

    x2d: (M, H), gate_proj: (N, H)  ->  (M, N) float32.
    """
    M = x2d.shape[0]
    if M <= 512:
        return _mm_small(x2d, gate_proj)
    return _mm_large(x2d, gate_proj)


@functools.partial(jax.jit, static_argnames=("hidden_size", "world_size"))
def mmrs_forward(hidden_states, gate_proj, *, hidden_size=HIDDEN_SIZE,
                 world_size=WORLD_SIZE):
    """Mirrors TestMMRSModel.forward."""
    view = hidden_states.reshape(-1, hidden_size)            # (M, H)
    mm = mm_pallas(view, gate_proj)                           # (M, 2H), Pallas
    # reduce_scatter along dim 0: world_size == 1 is the identity.
    if world_size == 1:
        return mm
    # TODO(synk): real multi-chip path — fuse the reduce-scatter into the M
    # grid (one peer-destined row chunk per grid step via
    # pltpu.make_async_remote_copy, accumulate incoming chunks in VMEM
    # scratch, gate with pltpu.get_barrier_semaphore +
    # CompilerParams(collective_id=...), switch the M axis to "arbitrary").
    raise NotImplementedError(
        "world_size > 1 reduce-scatter is not implemented (would require "
        "cross-chip RDMA); refusing to return un-reduced values.")


if __name__ == "__main__":
    key = jax.random.PRNGKey(0)
    k_x, k_w = jax.random.split(key)

    B, S, H = 2, 8, HIDDEN_SIZE          # M = B*S = 16 rows
    hidden_states = jax.random.normal(k_x, (B, S, H), dtype=jnp.float32)
    # torch.nn.init.normal_(gate_proj, std=0.02), shape (2H, H)
    gate_proj = 0.02 * jax.random.normal(k_w, (2 * H, H), dtype=jnp.float32)

    out = mmrs_forward(hidden_states, gate_proj)
    out = jax.block_until_ready(out)

    # Pure-JAX reference check.
    ref = hidden_states.reshape(-1, H) @ gate_proj.T
    assert out.shape == (B * S, 2 * H), out.shape
    assert jnp.allclose(out, ref, atol=1e-5, rtol=1e-5)

    print("KERNEL_OK")
</pallas_src>

<mosaic_0001>
module attributes {stable_mosaic.version = 11 : i64} {
  func.func @_mm_kernel(%arg0: i32, %arg1: memref<8x16xf32, #tpu.memory_space<vmem>>, %arg2: memref<32x16xf32, #tpu.memory_space<vmem>>, %arg3: memref<8x32xf32, #tpu.memory_space<vmem>>) attributes {dimension_semantics = [#tpu.dimension_semantics<parallel>], iteration_bounds = array<i64: 2>, scalar_prefetch = 0 : i64, scratch_operands = 0 : i64, tpu.core_type = #tpu.core_type<tc>, window_params = [{transform_indices = @transform_0, window_bounds = array<i64: 8, 16>}, {pipeline_mode = #tpu.pipeline_mode<synchronous>, transform_indices = @transform_1, window_bounds = array<i64: 32, 16>}, {transform_indices = @transform_2, window_bounds = array<i64: 8, 32>}]} {
    %c0 = arith.constant 0 : index
    %c0_0 = arith.constant 0 : index
    %0 = vector.load %arg1[%c0, %c0_0] : memref<8x16xf32, #tpu.memory_space<vmem>>, vector<8x16xf32>
    %c0_1 = arith.constant 0 : index
    %c0_2 = arith.constant 0 : index
    %1 = vector.load %arg2[%c0_1, %c0_2] : memref<32x16xf32, #tpu.memory_space<vmem>>, vector<32x16xf32>
    %cst = arith.constant dense<0.000000e+00> : vector<8x32xf32>
    %2 = tpu.matmul %0, %1, %cst {dimension_numbers = #tpu.dot_dimension_numbers<[1], [1], [0], [0], [0, 0, 1, 0], [], []>} : vector<8x16xf32>, vector<32x16xf32>, vector<8x32xf32> -> vector<8x32xf32>
    %c0_3 = arith.constant 0 : index
    %c0_4 = arith.constant 0 : index
    %3 = vector.load %arg3[%c0_3, %c0_4] : memref<8x32xf32, #tpu.memory_space<vmem>>, vector<8x32xf32>
    tpu.vector_store %arg3[%c0_3, %c0_4], %2 {strides = array<i32>} : memref<8x32xf32, #tpu.memory_space<vmem>>, vector<8x32xf32>,
    return
  }
  func.func @transform_0(%arg0: i32) -> (i32, i32) {
    %c0_i32 = arith.constant 0 : i32
    %c0_i32_0 = arith.constant 0 : i32
    return %arg0, %c0_i32 : i32, i32
  }
  func.func @transform_1(%arg0: i32) -> (i32, i32) {
    %c0_i32 = arith.constant 0 : i32
    %c0_i32_0 = arith.constant 0 : i32
    %c0_i32_1 = arith.constant 0 : i32
    return %c0_i32, %c0_i32_0 : i32, i32
  }
  func.func @transform_2(%arg0: i32) -> (i32, i32) {
    %c0_i32 = arith.constant 0 : i32
    %c0_i32_0 = arith.constant 0 : i32
    return %arg0, %c0_i32 : i32, i32
  }
}

</mosaic_0001>

<llo_original>
// kernel: mmrs_forward.1
$region0: #{mmrs_forward.1}
  #allocation0 [shape = 'u32[]', space=smem, size = 0x4, offset = 0x4, fixed_abs, tag = 'smem constant byte address 0x4 - core index']
  #allocation1 [shape = 'u32[144,128]{1,0:T(1,128)}', space=vmem, size = 0x12000, scoped, tag = 'internal scratch']
  %s0 = inlined_call_operand.vmem [shape: f32[16,16], index: 0, kind: input, shape index: {}]
  %s1 = inlined_call_operand.vmem [shape: f32[32,16], index: 1, kind: input, shape index: {}]
  %s2 = inlined_call_operand.hbm [shape: f32[16,32], index: 2, kind: output, shape index: {}]
  %s3 = sld [smem:[#allocation0]]
  $region41: #{mmrs_forward.1} parent=0
    _
  %s5 = ssub.s32 1, %s3
  %s6 = scalar_select 0, %s5, %s3
  $region1: #{mmrs_forward.1} parent=0
    #allocation2 [shape = 'u8[8192]{0}', space=vmem, size = 0x2000, scoped, tag = 'output window, operand 0']
    #allocation3 [shape = 's32[2]{0}', space=sflag, size = 0x8, scoped, tag = 'scoped memory for mmrs_forward.1']
    %7 = vsyncpa [#allocation3], 0
    %s8 = scalar_lea.sflag [#allocation3], 1
    %9 = vsyncpa %s8, 0
    loop: start=0, step=1, limit=4
    $region2: #{mmrs_forward.1} parent=1 // loop_pre_header
      _
    $region3: #{mmrs_forward.1} parent=1 // loop_header
      %s11 = sphi 0, %s15
      %p12 = scmp.ge.s32.totalorder %s11, 4
      %s21 = sphi 0, %s23
      %s24 = sphi 0, %s21
      %s25 = sphi 0, %s24
      %s41 = sphi 0, %s25
      %s45 = sphi 0, %s45
      %s47 = sphi 0, %s45
      %s48 = sphi 0, %s47
      %s62 = sphi 0, %s48
      %s68 = sphi 0, %s70
      %s71 = sphi 0, %s68
      %s72 = sphi 0, %s71
      %s88 = sphi 0, %s72
    $region4: #{mmrs_forward.1} parent=1 // loop_header_branch
      %14 = sbr.rel (%p12) target = $region8
    $region5: #{mmrs_forward.1} parent=1 // loop_body
      %s16 = ssub.s32 %s11, 1
      %s17 = ssub.s32 %s11, 2
      %s18 = sadd.s32 %s11, 1
      %s19 = ssub.s32 %s11, %s18
      %p20 = scmp.eq.s32.totalorder %s19, 0
      %s22 = sadd.s32 %s21, 1
      %s23 = scalar_select %p20, %s21, %s22
      %p26 = pneg %p20
      %p27 = scmp.eq.s32.totalorder %s11, 1
      %p28 = por %p26, %p27
      %p29 = scmp.ne.s32.totalorder %s21, %s24
      %p30 = scmp.eq.s32.totalorder %s11, 0
      %p31 = por %p29, %p30
      %p32 = scmp.ne.s32.totalorder %s21, %s24
      %p33 = scmp.eq.s32.totalorder %s16, 1
      %p34 = por %p32, %p33
      %p35 = scmp.ne.s32.totalorder %s24, %s25
      %p36 = scmp.eq.s32.totalorder %s16, 0
      %p37 = por %p35, %p36
      %p38 = scmp.ne.s32.totalorder %s24, %s25
      %p39 = scmp.eq.s32.totalorder %s17, 1
      %p40 = por %p38, %p39
      %p42 = scmp.ne.s32.totalorder %s25, %s41
      %p43 = scmp.eq.s32.totalorder %s17, 0
      %p44 = por %p42, %p43
      %s46 = sadd.s32 %s45, 1
      %p49 = scmp.eq.s32.totalorder %s11, 1
      %p50 = scmp.ne.s32.totalorder %s45, %s47
      %p51 = scmp.eq.s32.totalorder %s11, 0
      %p52 = por %p50, %p51
      %p53 = scmp.ne.s32.totalorder %s45, %s47
      %p54 = scmp.eq.s32.totalorder %s16, 1
      %p55 = por %p53, %p54
      %p56 = scmp.ne.s32.totalorder %s47, %s48
      %p57 = scmp.eq.s32.totalorder %s16, 0
      %p58 = por %p56, %p57
      %p59 = scmp.ne.s32.totalorder %s47, %s48
      %p60 = scmp.eq.s32.totalorder %s17, 1
      %p61 = por %p59, %p60
      %p63 = scmp.ne.s32.totalorder %s48, %s62
      %p64 = scmp.eq.s32.totalorder %s17, 0
      %p65 = por %p63, %p64
      %s66 = ssub.s32 %s11, %s18
      %p67 = scmp.eq.s32.totalorder %s66, 0
      %s69 = sadd.s32 %s68, 1
      %s70 = scalar_select %p67, %s68, %s69
      %p73 = pneg %p67
      %p74 = scmp.eq.s32.totalorder %s11, 1
      %p75 = por %p73, %p74
      %p76 = scmp.ne.s32.totalorder %s68, %s71
      %p77 = scmp.eq.s32.totalorder %s11, 0
      %p78 = por %p76, %p77
      %p79 = scmp.ne.s32.totalorder %s68, %s71
      %p80 = scmp.eq.s32.totalorder %s16, 1
      %p81 = por %p79, %p80
      %p82 = scmp.ne.s32.totalorder %s71, %s72
      %p83 = scmp.eq.s32.totalorder %s16, 0
      %p84 = por %p82, %p83
      %p85 = scmp.ne.s32.totalorder %s71, %s72
      %p86 = scmp.eq.s32.totalorder %s17, 1
      %p87 = por %p85, %p86
      %p89 = scmp.ne.s32.totalorder %s72, %s88
      %p90 = scmp.eq.s32.totalorder %s17, 0
      %p91 = por %p89, %p90
      %p92 = scmp.le.s32.totalorder 1, %s11
      %p93 = scmp.lt.s32.totalorder %s11, 3
      %p94 = pnand %p92, %p93
      %p95 = pneg %p94
      // Predicated region
      $region9: #{mmrs_forward.1} parent=5 // pred_check
        _
      $region10: #{mmrs_forward.1} parent=5 // pred_check_branch
        %97 = sbr.rel (%p94) target = $region12
      $region11: #{mmrs_forward.1} parent=5 // pred_region
        %s98 = ssub.s32 %s11, 1
        // Predicated region
        $region13: #{mmrs_forward.1} parent=11 // pred_check
          %p99 = pneg %p58
        $region14: #{mmrs_forward.1} parent=11 // pred_check_branch
          %101 = sbr.rel (%p99) target = $region16
        $region15: #{mmrs_forward.1} parent=11 // pred_region
          _
        $region16: #{mmrs_forward.1} parent=11 // pred_fallthru
          _
      $region12: #{mmrs_forward.1} parent=5 // pred_fallthru
        _
      %p102 = scmp.lt.s32.totalorder %s11, 2
      // Predicated region
      $region17: #{mmrs_forward.1} parent=5 // pred_check
        %p103 = pneg %p102
      $region18: #{mmrs_forward.1} parent=5 // pred_check_branch
        %105 = sbr.rel (%p103) target = $region20
      $region19: #{mmrs_forward.1} parent=5 // pred_region
        // Predicated region
        $region21: #{mmrs_forward.1} parent=19 // pred_check
          %p106 = pneg %p31
        $region22: #{mmrs_forward.1} parent=19 // pred_check_branch
          %108 = sbr.rel (%p106) target = $region24
        $region23: #{mmrs_forward.1} parent=19 // pred_region
          %p109 = scmp.lt.s32.totalorder %s11, 1
          %s110 = scalar_select %p109, %s11, 1
          %s111 = smul.addr %s110, 8
          %s112 = scalar_lea.vmem %s0, %s111
        $region24: #{mmrs_forward.1} parent=19 // pred_fallthru
          _
      $region20: #{mmrs_forward.1} parent=5 // pred_fallthru
        _
      %p113 = scmp.le.s32.totalorder 1, %s11
      %p114 = scmp.lt.s32.totalorder %s11, 3
      %p115 = pnand %p113, %p114
      %p116 = pneg %p115
      // Predicated region
      $region25: #{mmrs_forward.1} parent=5 // pred_check
        _
      $region26: #{mmrs_forward.1} parent=5 // pred_check_branch
        %118 = sbr.rel (%p115) target = $region28
      $region27: #{mmrs_forward.1} parent=5 // pred_region
        %s119 = ssub.s32 %s11, 1
        %p120 = scmp.lt.s32.totalorder %s16, 1
        %s121 = scalar_select %p120, %s16, 1
        %s122 = smul.addr %s121, 8
        %s123 = scalar_lea.vmem %s0, %s122
        %p124 = pneg %p37
        %p125 = pneg %p34
        %p126 = pneg %p58
        %p127 = pneg %p55
        %p128 = pneg %p84
        %p129 = pneg %p81
        %s130 = sand.u32 %s71, 1
        %s131 = scalar_lea.sflag [#allocation3], %s130
        %s132 = sand.u32 %s71, 1
        %s133 = smul.addr %s132, 8
        %s134 = scalar_lea.vmem [#allocation2], %s133
        %p135 = scmp.lt.s32.totalorder %s16, 1
        %s136 = scalar_select %p135, %s16, 1
        %s137 = smul.addr %s136, 8
        %s138 = scalar_lea.vmem %s0, %s137
        %v139 = vld [vmem:[%s138] sm:$0xff]
        %v140 = vld [vmem:[%s1] sm:$0xff]
        %v141 = vld [vmem:[%s1 + $0x8] sm:$0xff]
        %v142 = vld [vmem:[%s1 + $0x10] sm:$0xff]
        %v143 = vld [vmem:[%s1 + $0x18] sm:$0xff]
        %vm144 = vcmask 130048
        %v146 = vsel %vm144, %v139, 0
        %v149 = vsel %vm144, %v140, 0
        %v152 = vsel %vm144, %v141, 0
        %v155 = vsel %vm144, %v142, 0
        %v158 = vsel %vm144, %v143, 0
        %160 = vmatprep.subr.mxu0 0.0
        %161 = vmatpush1.xpose.msra.mxu0 0.0
        %162 = vmatprep.subr.mxu0 0.0
        %163 = vmatpush1.xpose.msra.mxu0 0.0
        %164 = vmatprep.subr.mxu0 0.0
        %165 = vmatpush1.xpose.msra.mxu0 0.0
        %166 = vmatprep.subr.mxu0 0.0
        %167 = vmatpush1.xpose.msra.mxu0 0.0
        %168 = vmatprep.subr.mxu0 0.0
        %169 = vmatpush1.xpose.msra.mxu0 0.0
        %170 = vmatprep.subr.mxu0 0.0
        %171 = vmatpush1.xpose.msra.mxu0 0.0
        %172 = vmatprep.subr.mxu0 0.0
        %173 = vmatpush1.xpose.msra.mxu0 0.0
        %174 = vmatprep.subr.mxu0 0.0
        %175 = vmatpush1.xpose.msra.mxu0 0.0
        %176 = vmatprep.subr.mxu0 0.0
        %177 = vmatpush1.xpose.msra.mxu0 0.0
        %178 = vmatprep.subr.mxu0 0.0
        %179 = vmatpush1.xpose.msra.mxu0 0.0
        %180 = vmatprep.subr.mxu0 0.0
        %181 = vmatpush1.xpose.msra.mxu0 0.0
        %182 = vmatprep.subr.mxu0 0.0
        %183 = vmatpush1.xpose.msra.mxu0 0.0
        %184 = vmatprep.subr.mxu0 0.0
        %185 = vmatpush1.xpose.msra.mxu0 %v158
        %186 = vmatprep.subr.mxu0 0.0
        %187 = vmatpush1.xpose.msra.mxu0 %v155
        %188 = vmatprep.subr.mxu0 0.0
        %189 = vmatpush1.xpose.msra.mxu0 %v152
        %190 = vmatprep.subr.mxu0 0.0
        %191 = vmatpush1.xpose.msra.mxu0 %v149
        %192 = vmatprep.subr.mxu0 0.0
        %193 = vmatpush2.xpose.msra.mxu0 0.0
        %194 = vmatprep.subr.mxu0 0.0
        %195 = vmatpush2.xpose.msra.mxu0 0.0
        %196 = vmatprep.subr.mxu0 0.0
        %197 = vmatpush2.xpose.msra.mxu0 0.0
        %198 = vmatprep.subr.mxu0 0.0
        %199 = vmatpush2.xpose.msra.mxu0 0.0
        %200 = vmatprep.subr.mxu0 0.0
        %201 = vmatpush2.xpose.msra.mxu0 0.0
        %202 = vmatprep.subr.mxu0 0.0
        %203 = vmatpush2.xpose.msra.mxu0 0.0
        %204 = vmatprep.subr.mxu0 0.0
        %205 = vmatpush2.xpose.msra.mxu0 0.0
        %206 = vmatprep.subr.mxu0 0.0
        %207 = vmatpush2.xpose.msra.mxu0 0.0
        %208 = vmatprep.subr.mxu0 0.0
        %209 = vmatpush2.xpose.msra.mxu0 0.0
        %210 = vmatprep.subr.mxu0 0.0
        %211 = vmatpush2.xpose.msra.mxu0 0.0
        %212 = vmatprep.subr.mxu0 0.0
        %213 = vmatpush2.xpose.msra.mxu0 0.0
        %214 = vmatprep.subr.mxu0 0.0
        %215 = vmatpush2.xpose.msra.mxu0 0.0
        %216 = vmatprep.subr.mxu0 0.0
        %217 = vmatpush2.xpose.msra.mxu0 0.0
        %218 = vmatprep.subr.mxu0 0.0
        %219 = vmatpush2.xpose.msra.mxu0 0.0
        %220 = vmatprep.subr.mxu0 0.0
        %221 = vmatpush2.xpose.msra.mxu0 0.0
        %222 = vmatprep.subr.mxu0 0.0
        %223 = vmatpush2.xpose.msra.mxu0 0.0
        %224 = vmatprep.mubr.f32.mxu0 0.0
        %225 = vmatmul.mubr.f32.gmra.mxu0 %v146
        %v226 = vpop.f32.mrf.mxu0
        %v227 = vadd.f32 0.0, %v226
        %v228 = vpop.f32.mrf.mxu0
        %229 = vdwg.mxu0
        %vm230 = vcmask 261120
        %231 = vst.msk [vmem:[%s134] sm:$0xff] %vm230, %v227
        %s232 = sand.u32 %s71, 1
        %s233 = scalar_lea.sflag [#allocation3], %s232
        %s234 = sand.u32 %s71, 1
        %s235 = smul.addr %s234, 8
        %s236 = scalar_lea.vmem [#allocation2], %s235
        // Predicated region
        $region29: #{mmrs_forward.1} parent=27 // pred_check
          %p237 = pneg %p81
        $region30: #{mmrs_forward.1} parent=27 // pred_check_branch
          %239 = sbr.rel (%p237) target = $region32
        $region31: #{mmrs_forward.1} parent=27 // pred_region
          %s241 = ssub.s32 128, 128
          %242 = vsyncadd %s233, %s241
          %s243 = smul.addr %s16, 128
          %s244 = scalar_lea.hbm %s2, %s243
          %s246 = sshll.u32 %s236, 4
          %s247 = int_to_ptr.vmem [resolvable:$true] %s246
          %249 = dma.vmem_to_hbm [thread:$0]  %s247, 128, %s244, %s233
        $region32: #{mmrs_forward.1} parent=27 // pred_fallthru
          _
      $region28: #{mmrs_forward.1} parent=5 // pred_fallthru
        _
      %p250 = scmp.le.s32.totalorder 2, %s11
      // Predicated region
      $region33: #{mmrs_forward.1} parent=5 // pred_check
        %p251 = pneg %p250
      $region34: #{mmrs_forward.1} parent=5 // pred_check_branch
        %253 = sbr.rel (%p251) target = $region36
      $region35: #{mmrs_forward.1} parent=5 // pred_region
        %s254 = ssub.s32 %s11, 2
        // Predicated region
        $region37: #{mmrs_forward.1} parent=35 // pred_check
          %p255 = pneg %p87
        $region38: #{mmrs_forward.1} parent=35 // pred_check_branch
          %257 = sbr.rel (%p255) target = $region40
        $region39: #{mmrs_forward.1} parent=35 // pred_region
          %s258 = sand.u32 %s72, 1
          %s259 = scalar_lea.sflag [#allocation3], %s258
          %s260 = sand.u32 %s72, 1
          %s261 = smul.addr %s260, 8
          %s262 = scalar_lea.vmem [#allocation2], %s261
          %263 = dma.done %s259, 128
        $region40: #{mmrs_forward.1} parent=35 // pred_fallthru
          _
      $region36: #{mmrs_forward.1} parent=5 // pred_fallthru
        _
    $region6: #{mmrs_forward.1} parent=1 // loop_footer
      %s15 = sadd.s32 1, %s11
    $region7: #{mmrs_forward.1} parent=1 // loop_footer_branch
      %10 = sbr.rel target = $region3
    $region8: #{mmrs_forward.1} parent=1 // loop_exit
      _
    %264 = vsyncpa [#allocation3], 1
    %s265 = scalar_lea.sflag [#allocation3], 1
    %266 = vsyncpa %s265, 1

</llo_original>
